<compile_context>
chip_gen: v6e
topology: v6e:2x2x1
jax: 0.10.0
libtpu: 0.0.40
codegen_flags: <defaults>
</compile_context>

<pallas_src>
import math
from functools import partial

import jax
import jax.numpy as jnp
from jax.experimental import pallas as pl
from jax.experimental.pallas import tpu as pltpu

_TWO_PI = 2.0 * math.pi


def _mlp_kernel(use_periodic, n_hidden, return_hidden, x_ref, *refs):
    """One batch tile (of packed rows) of the full forward pass.

    refs layout:
      periodic:     [wa, wb, wc, b1, (w_i, b_i) for i in 1..n_hidden-1, w_out] + outs
      non-periodic: [w1, b1,          (w_i, b_i) for i in 1..n_hidden-1, w_out] + outs
    outs = [h_ref, y_ref] if return_hidden else [y_ref]
    All weights are block-diagonal packed copies; biases are lane-tiled.
    """
    n_out = 2 if return_hidden else 1
    params = refs[:-n_out]
    outs = refs[-n_out:]

    x = x_ref[...]

    # ---- first hidden layer ----
    if use_periodic:
        wa = params[0][...]
        wb = params[1][...]
        wc = params[2][...]
        b1 = params[3][...]
        idx = 4
        tpx = _TWO_PI * x
        # x@Wa + sin(2*pi*x)@Wb + cos(2*pi*x)@Wc == concat([x, sin, cos], -1) @ W1
        z = (jnp.dot(x, wa, preferred_element_type=jnp.float32)
             + jnp.dot(jnp.sin(tpx), wb, preferred_element_type=jnp.float32)
             + jnp.dot(jnp.cos(tpx), wc, preferred_element_type=jnp.float32))
    else:
        w1 = params[0][...]
        b1 = params[1][...]
        idx = 2
        z = jnp.dot(x, w1, preferred_element_type=jnp.float32)
    h = jnp.tanh(z + b1)

    # ---- remaining hidden layers: Linear + Tanh ----
    for _ in range(1, n_hidden):
        w = params[idx][...]
        b = params[idx + 1][...]
        idx += 2
        h = jnp.tanh(jnp.dot(h, w, preferred_element_type=jnp.float32) + b)

    # ---- outputs: hidden activations (optional) and bias-free output head ----
    w_out = params[idx][...]
    y = jnp.dot(h, w_out, preferred_element_type=jnp.float32)

    if return_hidden:
        outs[0][...] = h.astype(outs[0].dtype)
    outs[-1][...] = y.astype(outs[-1].dtype)


def _block_diag(w, p):
    """(din, dout) -> (din*p, dout*p) block-diagonal copy (trace-time, tiny)."""
    if p == 1:
        return w
    din, dout = w.shape
    out = jnp.zeros((din * p, dout * p), w.dtype)
    for i in range(p):
        out = out.at[i * din:(i + 1) * din, i * dout:(i + 1) * dout].set(w)
    return out


def _round8(v):
    return ((int(v) + 7) // 8) * 8


def base_net_forward(x, weights, biases, w_out, *, use_periodic,
                     return_hidden=True, tile_rows=None, h_dtype=jnp.float32):
    """Row-packed, tiled, pipelined forward pass.

    weights[i]: (in, out)  (transposed vs. PyTorch storage)
    biases[i]:  (1, out)
    w_out:      (hidden_last, n_eqs)
    Returns (h, y) if return_hidden else y.
    """
    x = x.astype(jnp.float32)
    n, n_dim = x.shape
    n_hidden = len(weights)
    hidden_dims = [w.shape[1] for w in weights]
    hidden_last = hidden_dims[-1]
    out_dim = w_out.shape[1]

    # ---- row-packing factor: make hidden activations lane-dense (~128 lanes) ----
    pack = max(1, min(8, 128 // max(hidden_dims))) if max(hidden_dims) <= 128 else 1

    # ---- packed-row tiling: unified across generations, >= ~4 grid steps so both
    #      v7x TensorCores get work and the DMA pipeline stays fed ----
    m = -(-n // pack)  # packed rows needed
    if tile_rows is None:
        tile = min(512, max(8, _round8(-(-m // 4))))
    else:
        tile = max(8, (int(tile_rows) // 8) * 8)
        tile = min(tile, _round8(m))
    num_tiles = -(-m // tile)
    m_pad = num_tiles * tile
    n_pad = m_pad * pack

    if n_pad != n:
        x = jnp.pad(x, ((0, n_pad - n), (0, 0)))
    x_packed = x.reshape(m_pad, n_dim * pack)  # free, contiguous reshape

    # ---- packed (block-diagonal) params, built once at trace time ----
    flat_params = []
    w1 = weights[0].astype(jnp.float32)
    b1 = biases[0].astype(jnp.float32)
    if use_periodic:
        # Split W1's x/sin/cos row segments in the wrapper so the kernel never
        # slices across the (8,128) sublane tile.
        wa, wb, wc = w1[0:n_dim], w1[n_dim:2 * n_dim], w1[2 * n_dim:3 * n_dim]
        flat_params.extend([_block_diag(wa, pack), _block_diag(wb, pack),
                            _block_diag(wc, pack), jnp.tile(b1, (1, pack))])
    else:
        flat_params.extend([_block_diag(w1, pack), jnp.tile(b1, (1, pack))])
    for w, b in zip(weights[1:], biases[1:]):
        flat_params.extend([_block_diag(w.astype(jnp.float32), pack),
                            jnp.tile(b.astype(jnp.float32), (1, pack))])
    flat_params.append(_block_diag(w_out.astype(jnp.float32), pack))

    # x / h / y stream over the batch grid; params use a constant block index so
    # they are DMA'd once and stay resident in VMEM across tiles.
    x_spec = pl.BlockSpec((tile, n_dim * pack), lambda i: (i, 0))
    param_specs = [pl.BlockSpec(p.shape, lambda i: (0, 0)) for p in flat_params]

    out_shapes, out_specs = [], []
    if return_hidden:
        out_shapes.append(jax.ShapeDtypeStruct((m_pad, hidden_last * pack), h_dtype))
        out_specs.append(pl.BlockSpec((tile, hidden_last * pack), lambda i: (i, 0)))
    out_shapes.append(jax.ShapeDtypeStruct((m_pad, out_dim * pack), jnp.float32))
    out_specs.append(pl.BlockSpec((tile, out_dim * pack), lambda i: (i, 0)))

    # Advisory cost estimate so XLA schedules the surrounding graph sensibly.
    in_feat = 3 * n_dim if use_periodic else n_dim
    layer_dims = [in_feat] + hidden_dims
    flops_per_row = sum(2 * a * b for a, b in zip(layer_dims[:-1], layer_dims[1:]))
    flops_per_row += 2 * hidden_last * out_dim
    trans_per_row = sum(hidden_dims) + (2 * n_dim if use_periodic else 0)
    param_bytes = sum(int(p.size) * p.dtype.itemsize for p in flat_params)
    h_bytes = m_pad * hidden_last * pack * jnp.dtype(h_dtype).itemsize if return_hidden else 0
    out_bytes = m_pad * out_dim * pack * 4 + h_bytes
    cost = pl.CostEstimate(
        flops=int(n_pad * flops_per_row),
        transcendentals=int(n_pad * trans_per_row),
        bytes_accessed=int(n_pad * n_dim * 4 + param_bytes + out_bytes),
    )

    kernel = partial(_mlp_kernel, use_periodic, n_hidden, return_hidden)

    results = pl.pallas_call(
        kernel,
        grid=(num_tiles,),
        out_shape=tuple(out_shapes),
        in_specs=[x_spec] + param_specs,
        out_specs=tuple(out_specs),
        compiler_params=pltpu.CompilerParams(
            dimension_semantics=("parallel",),
            vmem_limit_bytes=32 * 1024 * 1024,
        ),
        cost_estimate=cost,
    )(x_packed, *flat_params)

    # Un-pack outputs (free reshapes) and slice off batch padding.  Note: padded
    # rows contain tanh(bias) garbage until sliced — do not alias the padded
    # buffers downstream.
    if return_hidden:
        h_p, y_p = results
        h = h_p.reshape(n_pad, hidden_last)[:n]
        y = y_p.reshape(n_pad, out_dim)[:n]
        return h, y
    (y_p,) = results
    return y_p.reshape(n_pad, out_dim)[:n]


def init_params(key, in_dim, hidden_dims, out_dim, use_periodic):
    """Deterministic init matching nn.Linear default: U(-1/sqrt(fan_in), 1/sqrt(fan_in)).

    Weights are returned as (in, out), i.e. transposed relative to PyTorch storage.
    """
    actual_in = in_dim * 3 if use_periodic else in_dim
    dims = [actual_in] + list(hidden_dims)
    weights, biases = [], []
    for i in range(len(dims) - 1):
        key, kw, kb = jax.random.split(key, 3)
        bound = 1.0 / math.sqrt(dims[i])
        weights.append(jax.random.uniform(kw, (dims[i], dims[i + 1]), jnp.float32,
                                          minval=-bound, maxval=bound))
        biases.append(jax.random.uniform(kb, (1, dims[i + 1]), jnp.float32,
                                         minval=-bound, maxval=bound))
    key, ko = jax.random.split(key)
    bound = 1.0 / math.sqrt(hidden_dims[-1])
    w_out = jax.random.uniform(ko, (hidden_dims[-1], out_dim), jnp.float32,
                               minval=-bound, maxval=bound)
    return weights, biases, w_out


def reference_forward(x, weights, biases, w_out, use_periodic):
    """Plain-JAX reference for correctness checking."""
    if use_periodic:
        x = jnp.concatenate(
            [x, jnp.sin(_TWO_PI * x), jnp.cos(_TWO_PI * x)], axis=-1)
    h = x
    for w, b in zip(weights, biases):
        h = jnp.tanh(h @ w + b)
    return h, h @ w_out


if __name__ == "__main__":
    # Small config consistent with the module: config.n_dim, config.hidden_dims, config.n_eqs
    n_dim = 4
    hidden_dims = (32, 32)
    n_eqs = 3
    use_periodic = True

    key = jax.random.PRNGKey(0)
    key_params, kx, kx2 = jax.random.split(key, 3)
    weights, biases, w_out = init_params(key_params, n_dim, hidden_dims, n_eqs, use_periodic)

    # --- small demo batch (single tile, heavy padding path) ---
    batch = 8
    x = jax.random.normal(kx, (batch, n_dim), dtype=jnp.float32)
    h, y = base_net_forward(x, weights, biases, w_out, use_periodic=use_periodic)
    jax.block_until_ready((h, y))

    h_ref, y_ref = reference_forward(x, weights, biases, w_out, use_periodic)
    assert h.shape == (batch, hidden_dims[-1]) and y.shape == (batch, n_eqs)
    assert jnp.allclose(h, h_ref, atol=1e-5, rtol=1e-5)
    assert jnp.allclose(y, y_ref, atol=1e-5, rtol=1e-5)

    # --- larger batch: auto tile heuristic -> multi-tile grid + remainder padding ---
    batch2 = 300
    x2 = jax.random.normal(kx2, (batch2, n_dim), dtype=jnp.float32)
    h2, y2 = base_net_forward(x2, weights, biases, w_out, use_periodic=use_periodic)
    jax.block_until_ready((h2, y2))
    h2_ref, y2_ref = reference_forward(x2, weights, biases, w_out, use_periodic)
    assert h2.shape == (batch2, hidden_dims[-1]) and y2.shape == (batch2, n_eqs)
    assert jnp.allclose(h2, h2_ref, atol=1e-5, rtol=1e-5)
    assert jnp.allclose(y2, y2_ref, atol=1e-5, rtol=1e-5)

    # --- explicit tile + y-only path (drops the large h HBM writeback) ---
    y3 = base_net_forward(x2, weights, biases, w_out, use_periodic=use_periodic,
                          return_hidden=False, tile_rows=64)
    jax.block_until_ready(y3)
    assert y3.shape == (batch2, n_eqs)
    assert jnp.allclose(y3, y2_ref, atol=1e-5, rtol=1e-5)

    # --- non-periodic branch ---
    weights_np, biases_np, w_out_np = init_params(key_params, n_dim, hidden_dims, n_eqs, False)
    h4, y4 = base_net_forward(x2, weights_np, biases_np, w_out_np, use_periodic=False)
    jax.block_until_ready((h4, y4))
    h4_ref, y4_ref = reference_forward(x2, weights_np, biases_np, w_out_np, False)
    assert jnp.allclose(h4, h4_ref, atol=1e-5, rtol=1e-5)
    assert jnp.allclose(y4, y4_ref, atol=1e-5, rtol=1e-5)

    print("KERNEL_OK")
</pallas_src>

<mosaic_0001>
module attributes {stable_mosaic.version = 11 : i64} {
  func.func @_mlp_kernel(%arg0: i32, %arg1: memref<8x16xf32, #tpu.memory_space<vmem>>, %arg2: memref<16x128xf32, #tpu.memory_space<vmem>>, %arg3: memref<16x128xf32, #tpu.memory_space<vmem>>, %arg4: memref<16x128xf32, #tpu.memory_space<vmem>>, %arg5: memref<1x128xf32, #tpu.memory_space<vmem>>, %arg6: memref<128x128xf32, #tpu.memory_space<vmem>>, %arg7: memref<1x128xf32, #tpu.memory_space<vmem>>, %arg8: memref<128x12xf32, #tpu.memory_space<vmem>>, %arg9: memref<8x128xf32, #tpu.memory_space<vmem>>, %arg10: memref<8x12xf32, #tpu.memory_space<vmem>>) attributes {dimension_semantics = [#tpu.dimension_semantics<parallel>], iteration_bounds = array<i64: 1>, scalar_prefetch = 0 : i64, scratch_operands = 0 : i64, tpu.core_type = #tpu.core_type<tc>, window_params = [{transform_indices = @transform_0, window_bounds = array<i64: 8, 16>}, {pipeline_mode = #tpu.pipeline_mode<synchronous>, transform_indices = @transform_1, window_bounds = array<i64: 16, 128>}, {pipeline_mode = #tpu.pipeline_mode<synchronous>, transform_indices = @transform_2, window_bounds = array<i64: 16, 128>}, {pipeline_mode = #tpu.pipeline_mode<synchronous>, transform_indices = @transform_3, window_bounds = array<i64: 16, 128>}, {pipeline_mode = #tpu.pipeline_mode<synchronous>, transform_indices = @transform_4, window_bounds = array<i64: 1, 128>}, {pipeline_mode = #tpu.pipeline_mode<synchronous>, transform_indices = @transform_5, window_bounds = array<i64: 128, 128>}, {pipeline_mode = #tpu.pipeline_mode<synchronous>, transform_indices = @transform_6, window_bounds = array<i64: 1, 128>}, {pipeline_mode = #tpu.pipeline_mode<synchronous>, transform_indices = @transform_7, window_bounds = array<i64: 128, 12>}, {transform_indices = @transform_8, window_bounds = array<i64: 8, 128>}, {transform_indices = @transform_9, window_bounds = array<i64: 8, 12>}]} {
    %c0 = arith.constant 0 : index
    %c0_0 = arith.constant 0 : index
    %0 = vector.load %arg1[%c0, %c0_0] : memref<8x16xf32, #tpu.memory_space<vmem>>, vector<8x16xf32>
    %c0_1 = arith.constant 0 : index
    %c0_2 = arith.constant 0 : index
    %1 = vector.load %arg2[%c0_1, %c0_2] : memref<16x128xf32, #tpu.memory_space<vmem>>, vector<16x128xf32>
    %c0_3 = arith.constant 0 : index
    %c0_4 = arith.constant 0 : index
    %2 = vector.load %arg3[%c0_3, %c0_4] : memref<16x128xf32, #tpu.memory_space<vmem>>, vector<16x128xf32>
    %c0_5 = arith.constant 0 : index
    %c0_6 = arith.constant 0 : index
    %3 = vector.load %arg4[%c0_5, %c0_6] : memref<16x128xf32, #tpu.memory_space<vmem>>, vector<16x128xf32>
    %c0_7 = arith.constant 0 : index
    %c0_8 = arith.constant 0 : index
    %4 = vector.load %arg5[%c0_7, %c0_8] : memref<1x128xf32, #tpu.memory_space<vmem>>, vector<1x128xf32>
    %cst = arith.constant 6.28318548 : f32
    %5 = vector.broadcast %cst : f32 to vector<8x16xf32>
    %6 = arith.mulf %5, %0 : vector<8x16xf32>
    %cst_9 = arith.constant dense<0.000000e+00> : vector<8x128xf32>
    %7 = tpu.matmul %0, %1, %cst_9 {dimension_numbers = #tpu.dot_dimension_numbers<[1], [0], [0], [1], [0, 0, 1, 1], [], []>} : vector<8x16xf32>, vector<16x128xf32>, vector<8x128xf32> -> vector<8x128xf32>
    %8 = math.sin %6 : vector<8x16xf32>
    %cst_10 = arith.constant dense<0.000000e+00> : vector<8x128xf32>
    %9 = tpu.matmul %8, %2, %cst_10 {dimension_numbers = #tpu.dot_dimension_numbers<[1], [0], [0], [1], [0, 0, 1, 1], [], []>} : vector<8x16xf32>, vector<16x128xf32>, vector<8x128xf32> -> vector<8x128xf32>
    %10 = arith.addf %7, %9 : vector<8x128xf32>
    %11 = math.cos %6 : vector<8x16xf32>
    %cst_11 = arith.constant dense<0.000000e+00> : vector<8x128xf32>
    %12 = tpu.matmul %11, %3, %cst_11 {dimension_numbers = #tpu.dot_dimension_numbers<[1], [0], [0], [1], [0, 0, 1, 1], [], []>} : vector<8x16xf32>, vector<16x128xf32>, vector<8x128xf32> -> vector<8x128xf32>
    %13 = arith.addf %10, %12 : vector<8x128xf32>
    %14 = vector.broadcast %4 : vector<1x128xf32> to vector<8x128xf32>
    %15 = arith.addf %13, %14 : vector<8x128xf32>
    %16 = math.tanh %15 : vector<8x128xf32>
    %c0_12 = arith.constant 0 : index
    %c0_13 = arith.constant 0 : index
    %17 = vector.load %arg6[%c0_12, %c0_13] : memref<128x128xf32, #tpu.memory_space<vmem>>, vector<128x128xf32>
    %c0_14 = arith.constant 0 : index
    %c0_15 = arith.constant 0 : index
    %18 = vector.load %arg7[%c0_14, %c0_15] : memref<1x128xf32, #tpu.memory_space<vmem>>, vector<1x128xf32>
    %cst_16 = arith.constant dense<0.000000e+00> : vector<8x128xf32>
    %19 = tpu.matmul %16, %17, %cst_16 {dimension_numbers = #tpu.dot_dimension_numbers<[1], [0], [0], [1], [0, 0, 1, 1], [], []>} : vector<8x128xf32>, vector<128x128xf32>, vector<8x128xf32> -> vector<8x128xf32>
    %20 = vector.broadcast %18 : vector<1x128xf32> to vector<8x128xf32>
    %21 = arith.addf %19, %20 : vector<8x128xf32>
    %22 = math.tanh %21 : vector<8x128xf32>
    %c0_17 = arith.constant 0 : index
    %c0_18 = arith.constant 0 : index
    %23 = vector.load %arg8[%c0_17, %c0_18] : memref<128x12xf32, #tpu.memory_space<vmem>>, vector<128x12xf32>
    %cst_19 = arith.constant dense<0.000000e+00> : vector<8x12xf32>
    %24 = tpu.matmul %22, %23, %cst_19 {dimension_numbers = #tpu.dot_dimension_numbers<[1], [0], [0], [1], [0, 0, 1, 1], [], []>} : vector<8x128xf32>, vector<128x12xf32>, vector<8x12xf32> -> vector<8x12xf32>
    %c0_20 = arith.constant 0 : index
    %c0_21 = arith.constant 0 : index
    %25 = vector.load %arg9[%c0_20, %c0_21] : memref<8x128xf32, #tpu.memory_space<vmem>>, vector<8x128xf32>
    tpu.vector_store %arg9[%c0_20, %c0_21], %22 {strides = array<i32>} : memref<8x128xf32, #tpu.memory_space<vmem>>, vector<8x128xf32>,
    %c0_22 = arith.constant 0 : index
    %c0_23 = arith.constant 0 : index
    %26 = vector.load %arg10[%c0_22, %c0_23] : memref<8x12xf32, #tpu.memory_space<vmem>>, vector<8x12xf32>
    tpu.vector_store %arg10[%c0_22, %c0_23], %24 {strides = array<i32>} : memref<8x12xf32, #tpu.memory_space<vmem>>, vector<8x12xf32>,
    return
  }
  func.func @transform_0(%arg0: i32) -> (i32, i32) {
    %c0_i32 = arith.constant 0 : i32
    %c0_i32_0 = arith.constant 0 : i32
    return %arg0, %c0_i32 : i32, i32
  }
  func.func @transform_1(%arg0: i32) -> (i32, i32) {
    %c0_i32 = arith.constant 0 : i32
    %c0_i32_0 = arith.constant 0 : i32
    %c0_i32_1 = arith.constant 0 : i32
    return %c0_i32, %c0_i32_0 : i32, i32
  }
  func.func @transform_2(%arg0: i32) -> (i32, i32) {
    %c0_i32 = arith.constant 0 : i32
    %c0_i32_0 = arith.constant 0 : i32
    %c0_i32_1 = arith.constant 0 : i32
    return %c0_i32, %c0_i32_0 : i32, i32
  }
  func.func @transform_3(%arg0: i32) -> (i32, i32) {
    %c0_i32 = arith.constant 0 : i32
    %c0_i32_0 = arith.constant 0 : i32
    %c0_i32_1 = arith.constant 0 : i32
    return %c0_i32, %c0_i32_0 : i32, i32
  }
  func.func @transform_4(%arg0: i32) -> (i32, i32) {
    %c0_i32 = arith.constant 0 : i32
    %c0_i32_0 = arith.constant 0 : i32
    %c0_i32_1 = arith.constant 0 : i32
    return %c0_i32, %c0_i32_0 : i32, i32
  }
  func.func @transform_5(%arg0: i32) -> (i32, i32) {
    %c0_i32 = arith.constant 0 : i32
    %c0_i32_0 = arith.constant 0 : i32
    %c0_i32_1 = arith.constant 0 : i32
    return %c0_i32, %c0_i32_0 : i32, i32
  }
  func.func @transform_6(%arg0: i32) -> (i32, i32) {
    %c0_i32 = arith.constant 0 : i32
    %c0_i32_0 = arith.constant 0 : i32
    %c0_i32_1 = arith.constant 0 : i32
    return %c0_i32, %c0_i32_0 : i32, i32
  }
  func.func @transform_7(%arg0: i32) -> (i32, i32) {
    %c0_i32 = arith.constant 0 : i32
    %c0_i32_0 = arith.constant 0 : i32
    %c0_i32_1 = arith.constant 0 : i32
    return %c0_i32, %c0_i32_0 : i32, i32
  }
  func.func @transform_8(%arg0: i32) -> (i32, i32) {
    %c0_i32 = arith.constant 0 : i32
    %c0_i32_0 = arith.constant 0 : i32
    return %arg0, %c0_i32 : i32, i32
  }
  func.func @transform_9(%arg0: i32) -> (i32, i32) {
    %c0_i32 = arith.constant 0 : i32
    %c0_i32_0 = arith.constant 0 : i32
    return %arg0, %c0_i32 : i32, i32
  }
}

</mosaic_0001>

<llo_original>
// kernel: tpu_custom_call.1
$region0: #{tpu_custom_call.1}
  #allocation0 [shape = 'u32[]', space=smem, size = 0x4, offset = 0x4, fixed_abs, tag = 'smem constant byte address 0x4 - core index']
  #allocation1 [shape = 'u32[144,128]{1,0:T(1,128)}', space=vmem, size = 0x12000, scoped, tag = 'internal scratch']
  %s0 = inlined_call_operand.vmem [shape: f32[8,16], index: 0, kind: input, shape index: {}]
  %s1 = inlined_call_operand.vmem [shape: f32[16,128], index: 1, kind: input, shape index: {}]
  %s2 = inlined_call_operand.hbm [shape: f32[16,128], index: 2, kind: input, shape index: {}]
  %s3 = inlined_call_operand.hbm [shape: f32[16,128], index: 3, kind: input, shape index: {}]
  %s4 = inlined_call_operand.vmem [shape: f32[1,128], index: 4, kind: input, shape index: {}]
  %s5 = inlined_call_operand.vmem [shape: f32[128,128], index: 5, kind: input, shape index: {}]
  %s6 = inlined_call_operand.vmem [shape: f32[1,128], index: 6, kind: input, shape index: {}]
  %s7 = inlined_call_operand.vmem [shape: f32[128,12], index: 7, kind: input, shape index: {}]
  %s8 = inlined_call_operand.hbm [shape: f32[8,128], index: 8, kind: output, shape index: {0}]
  %s9 = inlined_call_operand.hbm [shape: f32[8,12], index: 9, kind: output, shape index: {1}]
  %10 = xla_tuple %s8, %s9
  %s11 = sld [smem:[#allocation0]]
  $region58: #{tpu_custom_call.1} parent=0
    _
  %s13 = ssub.s32 1, %s11
  %s14 = scalar_select 0, %s13, %s11
  $region1: #{tpu_custom_call.1} parent=0
    #allocation2 [shape = 'u8[8192]{0}', space=vmem, size = 0x2000, scoped, tag = 'input window, operand 2, single buffered']
    #allocation3 [shape = 's32[1]{0}', space=sflag, size = 0x4, scoped, tag = 'scoped memory for tpu_custom_call.1']
    #allocation4 [shape = 's32[1]{0}', space=sflag, size = 0x4, scoped, tag = 'scoped memory for tpu_custom_call.1']
    #allocation5 [shape = 'u8[8192]{0}', space=vmem, size = 0x2000, scoped, tag = 'input window, operand 3, single buffered']
    #allocation6 [shape = 's32[1]{0}', space=sflag, size = 0x4, scoped, tag = 'scoped memory for tpu_custom_call.1']
    #allocation7 [shape = 'u8[4096]{0}', space=vmem, size = 0x1000, scoped, tag = 'output window, operand 0, single buffered']
    #allocation8 [shape = 'u8[4096]{0}', space=vmem, size = 0x1000, scoped, tag = 'output window, operand 1, single buffered']
    #allocation9 [shape = 's32[1]{0}', space=sflag, size = 0x4, scoped, tag = 'scoped memory for tpu_custom_call.1']
    %15 = vsyncpa [#allocation3], 0
    %16 = vsyncpa [#allocation6], 0
    %17 = vsyncpa [#allocation4], 0
    %18 = vsyncpa [#allocation9], 0
    // Predicated region
    $region2: #{tpu_custom_call.1} parent=1 // pred_check
      _
    $region3: #{tpu_custom_call.1} parent=1 // pred_check_branch
      %20 = sbr.rel (0) target = $region5
    $region4: #{tpu_custom_call.1} parent=1 // pred_region
      _
    $region5: #{tpu_custom_call.1} parent=1 // pred_fallthru
      _
    // Predicated region
    $region6: #{tpu_custom_call.1} parent=1 // pred_check
      _
    $region7: #{tpu_custom_call.1} parent=1 // pred_check_branch
      %22 = sbr.rel (0) target = $region9
    $region8: #{tpu_custom_call.1} parent=1 // pred_region
      _
    $region9: #{tpu_custom_call.1} parent=1 // pred_fallthru
      _
    // Predicated region
    $region10: #{tpu_custom_call.1} parent=1 // pred_check
      _
    $region11: #{tpu_custom_call.1} parent=1 // pred_check_branch
      %24 = sbr.rel (0) target = $region13
    $region12: #{tpu_custom_call.1} parent=1 // pred_region
      %s26 = ssub.s32 256, 256
      %27 = vsyncadd [#allocation3], %s26
      %s28 = sshll.u32 [#allocation2], 4
      %s29 = int_to_ptr.vmem [resolvable:$true] %s28
      %34 = dma.hbm_to_vmem [thread:$0]  %s2, 256, %s29, [#allocation3], 128, 128, 8
    $region13: #{tpu_custom_call.1} parent=1 // pred_fallthru
      _
    // Predicated region
    $region14: #{tpu_custom_call.1} parent=1 // pred_check
      _
    $region15: #{tpu_custom_call.1} parent=1 // pred_check_branch
      %36 = sbr.rel (0) target = $region17
    $region16: #{tpu_custom_call.1} parent=1 // pred_region
      %s38 = ssub.s32 256, 256
      %39 = vsyncadd [#allocation6], %s38
      %s40 = sshll.u32 [#allocation5], 4
      %s41 = int_to_ptr.vmem [resolvable:$true] %s40
      %46 = dma.hbm_to_vmem [thread:$0]  %s3, 256, %s41, [#allocation6], 128, 128, 8
    $region17: #{tpu_custom_call.1} parent=1 // pred_fallthru
      _
    // Predicated region
    $region18: #{tpu_custom_call.1} parent=1 // pred_check
      _
    $region19: #{tpu_custom_call.1} parent=1 // pred_check_branch
      %48 = sbr.rel (0) target = $region21
    $region20: #{tpu_custom_call.1} parent=1 // pred_region
      _
    $region21: #{tpu_custom_call.1} parent=1 // pred_fallthru
      _
    // Predicated region
    $region22: #{tpu_custom_call.1} parent=1 // pred_check
      _
    $region23: #{tpu_custom_call.1} parent=1 // pred_check_branch
      %50 = sbr.rel (0) target = $region25
    $region24: #{tpu_custom_call.1} parent=1 // pred_region
      _
    $region25: #{tpu_custom_call.1} parent=1 // pred_fallthru
      _
    // Predicated region
    $region26: #{tpu_custom_call.1} parent=1 // pred_check
      _
    $region27: #{tpu_custom_call.1} parent=1 // pred_check_branch
      %52 = sbr.rel (0) target = $region29
    $region28: #{tpu_custom_call.1} parent=1 // pred_region
      _
    $region29: #{tpu_custom_call.1} parent=1 // pred_fallthru
      _
    // Predicated region
    $region30: #{tpu_custom_call.1} parent=1 // pred_check
      _
    $region31: #{tpu_custom_call.1} parent=1 // pred_check_branch
      %54 = sbr.rel (0) target = $region33
    $region32: #{tpu_custom_call.1} parent=1 // pred_region
      _
    $region33: #{tpu_custom_call.1} parent=1 // pred_fallthru
      _
    // Predicated region
    $region34: #{tpu_custom_call.1} parent=1 // pred_check
      _
    $region35: #{tpu_custom_call.1} parent=1 // pred_check_branch
      %56 = sbr.rel (0) target = $region37
    $region36: #{tpu_custom_call.1} parent=1 // pred_region
      %57 = dma.done [#allocation3], 256
    $region37: #{tpu_custom_call.1} parent=1 // pred_fallthru
      _
    // Predicated region
    $region38: #{tpu_custom_call.1} parent=1 // pred_check
      _
    $region39: #{tpu_custom_call.1} parent=1 // pred_check_branch
      %59 = sbr.rel (0) target = $region41
    $region40: #{tpu_custom_call.1} parent=1 // pred_region
      %60 = dma.done [#allocation6], 256
    $region41: #{tpu_custom_call.1} parent=1 // pred_fallthru
      _
    %v61 = vld [vmem:[%s0] sm:$0xff]
    %v62 = vld [vmem:[%s1] sm:$0xff]
    %v63 = vld [vmem:[%s1 + $0x8] sm:$0xff]
    %v64 = vld [vmem:[#allocation2] sm:$0xff]
    %v65 = vld [vmem:[#allocation2 + $0x8] sm:$0xff]
    %v66 = vld [vmem:[#allocation5] sm:$0xff]
    %v67 = vld [vmem:[#allocation5 + $0x8] sm:$0xff]
    %v68 = vld [vmem:[%s4] sm:$0x1]
    %v69 = vmul.f32 %v61, 6.2831855
    %v70 = vand.u32 2147483647, %v69
    %vm71 = vcmp.le.f32.partialorder %v70, 0.7853982
    %vm72 = vcmp.lt.s32.totalorder %v69, 0
    %v73 = vand.u32 %v69, 2139095040
    %v74 = vshrl.u32 %v73, 23
    %v75 = vsub.s32 %v74, 127
    %v76 = vand.u32 2147483647, %v69
    %v77 = vand.u32 %v76, 8388607
    %v78 = vor.u32 %v77, 8388608
    %v79 = vsub.s32 0, %v78
    %v80 = vadd.s32 %v75, 1
    %vm81 = vcmp.gt.s32.totalorder %v80, 0
    %v82 = vsel %vm81, %v80, 0
    %v83 = vshrl.u32 %v82, 5
    %v84 = vand.u32 %v82, 31
    %v85 = vsub.s32 32, %v84
    %v86 = vshrl.u32 683565275, %v85
    %v87 = vshll.u32 683565275, %v84
    %v88 = vshrl.u32 2475754826, %v85
    %v89 = vor.u32 %v87, %v88
    %v90 = vshll.u32 2475754826, %v84
    %v91 = vshrl.u32 2131351028, %v85
    %v92 = vor.u32 %v90, %v91
    %v93 = vshll.u32 2131351028, %v84
    %v94 = vshrl.u32 2102212464, %v85
    %v95 = vor.u32 %v93, %v94
    %v96 = vshll.u32 2102212464, %v84
    %v97 = vshrl.u32 920167782, %v85
    %v98 = vor.u32 %v96, %v97
    %v99 = vshll.u32 920167782, %v84
    %v100 = vshrl.u32 1326507024, %v85
    %v101 = vor.u32 %v99, %v100
    %vm102 = vcmp.lt.s32.totalorder %v83, 1
    %vm103 = vcmp.lt.s32.totalorder %v83, 2
    %vm104 = vcmp.lt.s32.totalorder %v83, 3
    %vm105 = vcmp.lt.s32.totalorder %v83, 4
    %v106 = vsel %vm102, %v86, %v89
    %v107 = vsel %vm105, %v95, 2102212464
    %v108 = vsel %vm104, %v92, %v107
    %v109 = vsel %vm103, %v106, %v108
    %v110 = vsel %vm102, %v89, %v92
    %v111 = vsel %vm105, %v98, 920167782
    %v112 = vsel %vm104, %v95, %v111
    %v113 = vsel %vm103, %v110, %v112
    %v114 = vsel %vm102, %v92, %v95
    %v115 = vsel %vm105, %v101, 1326507024
    %v116 = vsel %vm104, %v98, %v115
    %v117 = vsel %vm103, %v114, %v116
    %v118 = vshll.u32 %v78, 8
    %v119 = vmul.u32.u64.compose %v118, %v117
    %v120 = vextract.low.u32 %v119
    %v121 = vextract.high.u32 %v119
    %v122 = vmul.u32.u64.compose %v118, %v113
    %v123 = vextract.low.u32 %v122
    %v124 = vextract.high.u32 %v122
    %v125 = vmul.u32 %v118, %v109
    %v126 = vadd.s32 %v121, %v123
    %vm127 = vc.u32 %v121, %v123
    %v128 = vadd.s32 %v124, 1
    %v129 = vsel %vm127, %v128, %v124
    %v130 = vadd.s32 %v125, %v129
    %v131 = vadd.s32 %v130, 536870912
    %v132 = vshrl.u32 %v131, 30
    %v133 = vshll.u32 %v132, 30
    %v134 = vsub.s32 %v130, %v133
    %vm135 = vcmp.lt.s32.totalorder %v134, 0
    %v136 = vsub.s32 0, %v134
    %v137 = vsel %vm135, %v136, %v134
    %v138 = vclz %v137
    %v139 = vsub.s32 %v138, 2
    %vm140 = vcmp.gt.s32.totalorder 0, %v139
    %v141 = vsel %vm140, 0, %v139
    %v142 = vsub.s32 32, %v141
    %v143 = vshll.u32 %v134, %v141
    %v144 = vshrl.u32 %v126, %v142
    %v145 = vor.u32 %v143, %v144
    %v146 = vsub.s32 4294967266, %v141
    %v147 = vadd.s32 %v146, 127
    %v148 = vshll.u32 %v147, 23
    %v149 = vor.u32 4788187, %v148
    %v150 = vand.u32 2147483647, %v149
    %v152 = vcvt.s32.f32 %v145
    %v153 = vmul.f32 %v152, %v150
    %v154 = vxor.u32 %v153, 2147483648
    %v155 = vsel %vm72, %v154, %v153
    %v156 = vsub.s32 4, %v132
    %v157 = vsel %vm72, %v156, %v132
    %v158 = vsel %vm71, %v69, %v155
    %v159 = vsel %vm71, 0, %v157
    %v160 = vcosq.f32.pop %v158
    %v161 = vsinq.f32.pop %v158
    %vm162 = vweird.f32 %v69
    %v163 = vadd.s32 %v159, 3
    %v164 = vand.u32 %v163, 3
    %vm165 = vcmp.lt.s32.totalorder %v164, 2
    %vm166 = vcmp.eq.s32.totalorder %v164, 0
    %v167 = vxor.u32 %v161, 2147483648
    %v168 = vsel %vm166, %v160, %v167
    %vm169 = vcmp.eq.s32.totalorder %v164, 2
    %v170 = vxor.u32 %v160, 2147483648
    %v171 = vsel %vm169, %v170, %v161
    %v172 = vsel %vm165, %v168, %v171
    %v173 = vsel %vm162, nan, %v172
    %vm174 = vcmask 130048
    %v176 = vsel %vm174, %v173, 0
    %178 = vmatprep.subr.mxu0 0.0
    %179 = vmatpush1.msra.mxu0 0.0
    %180 = vmatprep.subr.mxu0 0.0
    %181 = vmatpush1.msra.mxu0 0.0
    %182 = vmatprep.subr.mxu0 0.0
    %183 = vmatpush1.msra.mxu0 0.0
    %184 = vmatprep.subr.mxu0 0.0
    %185 = vmatpush1.msra.mxu0 0.0
    %186 = vmatprep.subr.mxu0 0.0
    %187 = vmatpush1.msra.mxu0 0.0
    %188 = vmatprep.subr.mxu0 0.0
    %189 = vmatpush1.msra.mxu0 0.0
    %190 = vmatprep.subr.mxu0 0.0
    %191 = vmatpush1.msra.mxu0 0.0
    %192 = vmatprep.subr.mxu0 0.0
    %193 = vmatpush1.msra.mxu0 0.0
    %194 = vmatprep.subr.mxu0 0.0
    %195 = vmatpush1.msra.mxu0 0.0
    %196 = vmatprep.subr.mxu0 0.0
    %197 = vmatpush1.msra.mxu0 0.0
    %198 = vmatprep.subr.mxu0 0.0
    %199 = vmatpush1.msra.mxu0 0.0
    %200 = vmatprep.subr.mxu0 0.0
    %201 = vmatpush1.msra.mxu0 0.0
    %202 = vmatprep.subr.mxu0 0.0
    %203 = vmatpush1.msra.mxu0 0.0
    %204 = vmatprep.subr.mxu0 0.0
    %205 = vmatpush1.msra.mxu0 0.0
    %206 = vmatprep.subr.mxu0 0.0
    %207 = vmatpush1.msra.mxu0 %v65
    %208 = vmatprep.subr.mxu0 0.0
    %209 = vmatpush1.msra.mxu0 %v64
    %210 = vmatprep.subr.mxu0 0.0
    %211 = vmatpush2.msra.mxu0 0.0
    %212 = vmatprep.subr.mxu0 0.0
    %213 = vmatpush2.msra.mxu0 0.0
    %214 = vmatprep.subr.mxu0 0.0
    %215 = vmatpush2.msra.mxu0 0.0
    %216 = vmatprep.subr.mxu0 0.0
    %217 = vmatpush2.msra.mxu0 0.0
    %218 = vmatprep.subr.mxu0 0.0
    %219 = vmatpush2.msra.mxu0 0.0
    %220 = vmatprep.subr.mxu0 0.0
    %221 = vmatpush2.msra.mxu0 0.0
    %222 = vmatprep.subr.mxu0 0.0
    %223 = vmatpush2.msra.mxu0 0.0
    %224 = vmatprep.subr.mxu0 0.0
    %225 = vmatpush2.msra.mxu0 0.0
    %226 = vmatprep.subr.mxu0 0.0
    %227 = vmatpush2.msra.mxu0 0.0
    %228 = vmatprep.subr.mxu0 0.0
    %229 = vmatpush2.msra.mxu0 0.0
    %230 = vmatprep.subr.mxu0 0.0
    %231 = vmatpush2.msra.mxu0 0.0
    %232 = vmatprep.subr.mxu0 0.0
    %233 = vmatpush2.msra.mxu0 0.0
    %234 = vmatprep.subr.mxu0 0.0
    %235 = vmatpush2.msra.mxu0 0.0
    %236 = vmatprep.subr.mxu0 0.0
    %237 = vmatpush2.msra.mxu0 0.0
    %238 = vmatprep.subr.mxu0 0.0
    %239 = vmatpush2.msra.mxu0 0.0
    %240 = vmatprep.subr.mxu0 0.0
    %241 = vmatpush2.msra.mxu0 0.0
    %242 = vmatprep.mubr.f32.mxu0 0.0
    %243 = vmatmul.mubr.f32.gmra.mxu0 %v176
    %v244 = vpop.f32.mrf.mxu0
    %v245 = vadd.f32 0.0, %v244
    %v246 = vpop.f32.mrf.mxu0
    %247 = vdwg.mxu0
    %v249 = vsel %vm174, %v61, 0
    %251 = vmatprep.subr.mxu0 0.0
    %252 = vmatpush1.msra.mxu0 0.0
    %253 = vmatprep.subr.mxu0 0.0
    %254 = vmatpush1.msra.mxu0 0.0
    %255 = vmatprep.subr.mxu0 0.0
    %256 = vmatpush1.msra.mxu0 0.0
    %257 = vmatprep.subr.mxu0 0.0
    %258 = vmatpush1.msra.mxu0 0.0
    %259 = vmatprep.subr.mxu0 0.0
    %260 = vmatpush1.msra.mxu0 0.0
    %261 = vmatprep.subr.mxu0 0.0
    %262 = vmatpush1.msra.mxu0 0.0
    %263 = vmatprep.subr.mxu0 0.0
    %264 = vmatpush1.msra.mxu0 0.0
    %265 = vmatprep.subr.mxu0 0.0
    %266 = vmatpush1.msra.mxu0 0.0
    %267 = vmatprep.subr.mxu0 0.0
    %268 = vmatpush1.msra.mxu0 0.0
    %269 = vmatprep.subr.mxu0 0.0
    %270 = vmatpush1.msra.mxu0 0.0
    %271 = vmatprep.subr.mxu0 0.0
    %272 = vmatpush1.msra.mxu0 0.0
    %273 = vmatprep.subr.mxu0 0.0
    %274 = vmatpush1.msra.mxu0 0.0
    %275 = vmatprep.subr.mxu0 0.0
    %276 = vmatpush1.msra.mxu0 0.0
    %277 = vmatprep.subr.mxu0 0.0
    %278 = vmatpush1.msra.mxu0 0.0
    %279 = vmatprep.subr.mxu0 0.0
    %280 = vmatpush1.msra.mxu0 %v63
    %281 = vmatprep.subr.mxu0 0.0
    %282 = vmatpush1.msra.mxu0 %v62
    %283 = vmatprep.subr.mxu0 0.0
    %284 = vmatpush2.msra.mxu0 0.0
    %285 = vmatprep.subr.mxu0 0.0
    %286 = vmatpush2.msra.mxu0 0.0
    %287 = vmatprep.subr.mxu0 0.0
    %288 = vmatpush2.msra.mxu0 0.0
    %289 = vmatprep.subr.mxu0 0.0
    %290 = vmatpush2.msra.mxu0 0.0
    %291 = vmatprep.subr.mxu0 0.0
    %292 = vmatpush2.msra.mxu0 0.0
    %293 = vmatprep.subr.mxu0 0.0
    %294 = vmatpush2.msra.mxu0 0.0
    %295 = vmatprep.subr.mxu0 0.0
    %296 = vmatpush2.msra.mxu0 0.0
    %297 = vmatprep.subr.mxu0 0.0
    %298 = vmatpush2.msra.mxu0 0.0
    %299 = vmatprep.subr.mxu0 0.0
    %300 = vmatpush2.msra.mxu0 0.0
    %301 = vmatprep.subr.mxu0 0.0
    %302 = vmatpush2.msra.mxu0 0.0
    %303 = vmatprep.subr.mxu0 0.0
    %304 = vmatpush2.msra.mxu0 0.0
    %305 = vmatprep.subr.mxu0 0.0
    %306 = vmatpush2.msra.mxu0 0.0
    %307 = vmatprep.subr.mxu0 0.0
    %308 = vmatpush2.msra.mxu0 0.0
    %309 = vmatprep.subr.mxu0 0.0
    %310 = vmatpush2.msra.mxu0 0.0
    %311 = vmatprep.subr.mxu0 0.0
    %312 = vmatpush2.msra.mxu0 0.0
    %313 = vmatprep.subr.mxu0 0.0
    %314 = vmatpush2.msra.mxu0 0.0
    %315 = vmatprep.mubr.f32.mxu0 0.0
    %316 = vmatmul.mubr.f32.gmra.mxu0 %v249
    %v317 = vpop.f32.mrf.mxu0
    %v318 = vadd.f32 %v245, %v317
    %v319 = vpop.f32.mrf.mxu0
    %320 = vdwg.mxu0
    %v321 = vand.u32 2147483647, %v69
    %vm322 = vcmp.le.f32.partialorder %v321, 0.7853982
    %vm323 = vcmp.lt.s32.totalorder %v69, 0
    %v324 = vand.u32 %v69, 2139095040
    %v325 = vshrl.u32 %v324, 23
    %v326 = vsub.s32 %v325, 127
    %v327 = vand.u32 2147483647, %v69
    %v328 = vand.u32 %v327, 8388607
    %v329 = vor.u32 %v328, 8388608
    %v330 = vsub.s32 0, %v329
    %v331 = vadd.s32 %v326, 1
    %vm332 = vcmp.gt.s32.totalorder %v331, 0
    %v333 = vsel %vm332, %v331, 0
    %v334 = vshrl.u32 %v333, 5
    %v335 = vand.u32 %v333, 31
    %v336 = vsub.s32 32, %v335
    %v337 = vshrl.u32 683565275, %v336
    %v338 = vshll.u32 683565275, %v335
    %v339 = vshrl.u32 2475754826, %v336
    %v340 = vor.u32 %v338, %v339
    %v341 = vshll.u32 2475754826, %v335
    %v342 = vshrl.u32 2131351028, %v336
    %v343 = vor.u32 %v341, %v342
    %v344 = vshll.u32 2131351028, %v335
    %v345 = vshrl.u32 2102212464, %v336
    %v346 = vor.u32 %v344, %v345
    %v347 = vshll.u32 2102212464, %v335
    %v348 = vshrl.u32 920167782, %v336
    %v349 = vor.u32 %v347, %v348
    %v350 = vshll.u32 920167782, %v335
    %v351 = vshrl.u32 1326507024, %v336
    %v352 = vor.u32 %v350, %v351
    %vm353 = vcmp.lt.s32.totalorder %v334, 1
    %vm354 = vcmp.lt.s32.totalorder %v334, 2
    %vm355 = vcmp.lt.s32.totalorder %v334, 3
    %vm356 = vcmp.lt.s32.totalorder %v334, 4
    %v357 = vsel %vm353, %v337, %v340
    %v358 = vsel %vm356, %v346, 2102212464
    %v359 = vsel %vm355, %v343, %v358
    %v360 = vsel %vm354, %v357, %v359
    %v361 = vsel %vm353, %v340, %v343
    %v362 = vsel %vm356, %v349, 920167782
    %v363 = vsel %vm355, %v346, %v362
    %v364 = vsel %vm354, %v361, %v363
    %v365 = vsel %vm353, %v343, %v346
    %v366 = vsel %vm356, %v352, 1326507024
    %v367 = vsel %vm355, %v349, %v366
    %v368 = vsel %vm354, %v365, %v367
    %v369 = vshll.u32 %v329, 8
    %v370 = vmul.u32.u64.compose %v369, %v368
    %v371 = vextract.low.u32 %v370
    %v372 = vextract.high.u32 %v370
    %v373 = vmul.u32.u64.compose %v369, %v364
    %v374 = vextract.low.u32 %v373
    %v375 = vextract.high.u32 %v373
    %v376 = vmul.u32 %v369, %v360
    %v377 = vadd.s32 %v372, %v374
    %vm378 = vc.u32 %v372, %v374
    %v379 = vadd.s32 %v375, 1
    %v380 = vsel %vm378, %v379, %v375
    %v381 = vadd.s32 %v376, %v380
    %v382 = vadd.s32 %v381, 536870912
    %v383 = vshrl.u32 %v382, 30
    %v384 = vshll.u32 %v383, 30
    %v385 = vsub.s32 %v381, %v384
    %vm386 = vcmp.lt.s32.totalorder %v385, 0
    %v387 = vsub.s32 0, %v385
    %v388 = vsel %vm386, %v387, %v385
    %v389 = vclz %v388
    %v390 = vsub.s32 %v389, 2
    %vm391 = vcmp.gt.s32.totalorder 0, %v390
    %v392 = vsel %vm391, 0, %v390
    %v393 = vsub.s32 32, %v392
    %v394 = vshll.u32 %v385, %v392
    %v395 = vshrl.u32 %v377, %v393
    %v396 = vor.u32 %v394, %v395
    %v397 = vsub.s32 4294967266, %v392
    %v398 = vadd.s32 %v397, 127
    %v399 = vshll.u32 %v398, 23
    %v400 = vor.u32 4788187, %v399
    %v401 = vand.u32 2147483647, %v400
    %v403 = vcvt.s32.f32 %v396
    %v404 = vmul.f32 %v403, %v401
    %v405 = vxor.u32 %v404, 2147483648
    %v406 = vsel %vm323, %v405, %v404
    %v407 = vsub.s32 4, %v383
    %v408 = vsel %vm323, %v407, %v383
    %v409 = vsel %vm322, %v69, %v406
    %v410 = vsel %vm322, 0, %v408
    %v411 = vcosq.f32.pop %v409
    %v412 = vsinq.f32.pop %v409
    %vm413 = vweird.f32 %v69
    %v414 = vand.u32 %v410, 3
    %vm415 = vcmp.lt.s32.totalorder %v414, 2
    %vm416 = vcmp.eq.s32.totalorder %v414, 0
    %v417 = vxor.u32 %v412, 2147483648
    %v418 = vsel %vm416, %v411, %v417
    %vm419 = vcmp.eq.s32.totalorder %v414, 2
    %v420 = vxor.u32 %v411, 2147483648
    %v421 = vsel %vm419, %v420, %v412
    %v422 = vsel %vm415, %v418, %v421
    %v423 = vsel %vm413, nan, %v422
    %v425 = vsel %vm174, %v423, 0
    %427 = vmatprep.subr.mxu0 0.0
    %428 = vmatpush1.msra.mxu0 0.0
    %429 = vmatprep.subr.mxu0 0.0
    %430 = vmatpush1.msra.mxu0 0.0
    %431 = vmatprep.subr.mxu0 0.0
    %432 = vmatpush1.msra.mxu0 0.0
    %433 = vmatprep.subr.mxu0 0.0
    %434 = vmatpush1.msra.mxu0 0.0
    %435 = vmatprep.subr.mxu0 0.0
    %436 = vmatpush1.msra.mxu0 0.0
    %437 = vmatprep.subr.mxu0 0.0
    %438 = vmatpush1.msra.mxu0 0.0
    %439 = vmatprep.subr.mxu0 0.0
    %440 = vmatpush1.msra.mxu0 0.0
    %441 = vmatprep.subr.mxu0 0.0
    %442 = vmatpush1.msra.mxu0 0.0
    %443 = vmatprep.subr.mxu0 0.0
    %444 = vmatpush1.msra.mxu0 0.0
    %445 = vmatprep.subr.mxu0 0.0
    %446 = vmatpush1.msra.mxu0 0.0
    %447 = vmatprep.subr.mxu0 0.0
    %448 = vmatpush1.msra.mxu0 0.0
    %449 = vmatprep.subr.mxu0 0.0
    %450 = vmatpush1.msra.mxu0 0.0
    %451 = vmatprep.subr.mxu0 0.0
    %452 = vmatpush1.msra.mxu0 0.0
    %453 = vmatprep.subr.mxu0 0.0
    %454 = vmatpush1.msra.mxu0 0.0
    %455 = vmatprep.subr.mxu0 0.0
    %456 = vmatpush1.msra.mxu0 %v67
    %457 = vmatprep.subr.mxu0 0.0
    %458 = vmatpush1.msra.mxu0 %v66
    %459 = vmatprep.subr.mxu0 0.0
    %460 = vmatpush2.msra.mxu0 0.0
    %461 = vmatprep.subr.mxu0 0.0
    %462 = vmatpush2.msra.mxu0 0.0
    %463 = vmatprep.subr.mxu0 0.0
    %464 = vmatpush2.msra.mxu0 0.0
    %465 = vmatprep.subr.mxu0 0.0
    %466 = vmatpush2.msra.mxu0 0.0
    %467 = vmatprep.subr.mxu0 0.0
    %468 = vmatpush2.msra.mxu0 0.0
    %469 = vmatprep.subr.mxu0 0.0
    %470 = vmatpush2.msra.mxu0 0.0
    %471 = vmatprep.subr.mxu0 0.0
    %472 = vmatpush2.msra.mxu0 0.0
    %473 = vmatprep.subr.mxu0 0.0
    %474 = vmatpush2.msra.mxu0 0.0
    %475 = vmatprep.subr.mxu0 0.0
    %476 = vmatpush2.msra.mxu0 0.0
    %477 = vmatprep.subr.mxu0 0.0
    %478 = vmatpush2.msra.mxu0 0.0
    %479 = vmatprep.subr.mxu0 0.0
    %480 = vmatpush2.msra.mxu0 0.0
    %481 = vmatprep.subr.mxu0 0.0
    %482 = vmatpush2.msra.mxu0 0.0
    %483 = vmatprep.subr.mxu0 0.0
    %484 = vmatpush2.msra.mxu0 0.0
    %485 = vmatprep.subr.mxu0 0.0
    %486 = vmatpush2.msra.mxu0 0.0
    %487 = vmatprep.subr.mxu0 0.0
    %488 = vmatpush2.msra.mxu0 0.0
    %489 = vmatprep.subr.mxu0 0.0
    %490 = vmatpush2.msra.mxu0 0.0
    %491 = vmatprep.mubr.f32.mxu0 0.0
    %492 = vmatmul.mubr.f32.gmra.mxu0 %v425
    %v493 = vpop.f32.mrf.mxu0
    %v494 = vadd.f32 0.0, %v493
    %v495 = vpop.f32.mrf.mxu0
    %496 = vdwg.mxu0
    %v497 = vadd.f32 %v318, %v494
    %v499 = vlaneseq
    %v500 = vshrl.u32 %v499, 7
    %v501 = vsub.s32 0, %v500
    %v502 = vrot.slane %v68, %v501
    %v504 = vadd.f32 %v497, %v502
    %v505 = vtanh.pop %v504
    %v506 = vld [vmem:[%s5] sm:$0xff]
    %v507 = vld [vmem:[%s5 + $0x8] sm:$0xff]
    %v508 = vld [vmem:[%s5 + $0x10] sm:$0xff]
    %v509 = vld [vmem:[%s5 + $0x18] sm:$0xff]
    %v510 = vld [vmem:[%s5 + $0x20] sm:$0xff]
    %v511 = vld [vmem:[%s5 + $0x28] sm:$0xff]
    %v512 = vld [vmem:[%s5 + $0x30] sm:$0xff]
    %v513 = vld [vmem:[%s5 + $0x38] sm:$0xff]
    %v514 = vld [vmem:[%s5 + $0x40] sm:$0xff]
    %v515 = vld [vmem:[%s5 + $0x48] sm:$0xff]
    %v516 = vld [vmem:[%s5 + $0x50] sm:$0xff]
    %v517 = vld [vmem:[%s5 + $0x58] sm:$0xff]
    %v518 = vld [vmem:[%s5 + $0x60] sm:$0xff]
    %v519 = vld [vmem:[%s5 + $0x68] sm:$0xff]
    %v520 = vld [vmem:[%s5 + $0x70] sm:$0xff]
    %v521 = vld [vmem:[%s5 + $0x78] sm:$0xff]
    %v522 = vld [vmem:[%s6] sm:$0x1]
    %v524 = vlaneseq
    %v525 = vshrl.u32 %v524, 7
    %v526 = vsub.s32 0, %v525
    %v527 = vrot.slane %v522, %v526
    %529 = vmatprep.subr.mxu0 0.0
    %530 = vmatpush1.msra.mxu0 %v521
    %531 = vmatprep.subr.mxu0 0.0
    %532 = vmatpush1.msra.mxu0 %v520
    %533 = vmatprep.subr.mxu0 0.0
    %534 = vmatpush1.msra.mxu0 %v519
    %535 = vmatprep.subr.mxu0 0.0
    %536 = vmatpush1.msra.mxu0 %v518
    %537 = vmatprep.subr.mxu0 0.0
    %538 = vmatpush1.msra.mxu0 %v517
    %539 = vmatprep.subr.mxu0 0.0
    %540 = vmatpush1.msra.mxu0 %v516
    %541 = vmatprep.subr.mxu0 0.0
    %542 = vmatpush1.msra.mxu0 %v515
    %543 = vmatprep.subr.mxu0 0.0
    %544 = vmatpush1.msra.mxu0 %v514
    %545 = vmatprep.subr.mxu0 0.0
    %546 = vmatpush1.msra.mxu0 %v513
    %547 = vmatprep.subr.mxu0 0.0
    %548 = vmatpush1.msra.mxu0 %v512
    %549 = vmatprep.subr.mxu0 0.0
    %550 = vmatpush1.msra.mxu0 %v511
    %551 = vmatprep.subr.mxu0 0.0
    %552 = vmatpush1.msra.mxu0 %v510
    %553 = vmatprep.subr.mxu0 0.0
    %554 = vmatpush1.msra.mxu0 %v509
    %555 = vmatprep.subr.mxu0 0.0
    %556 = vmatpush1.msra.mxu0 %v508
    %557 = vmatprep.subr.mxu0 0.0
    %558 = vmatpush1.msra.mxu0 %v507
    %559 = vmatprep.subr.mxu0 0.0
    %560 = vmatpush1.msra.mxu0 %v506
    %561 = vmatprep.subr.mxu0 0.0
    %562 = vmatpush2.msra.mxu0 0.0
    %563 = vmatprep.subr.mxu0 0.0
    %564 = vmatpush2.msra.mxu0 0.0
    %565 = vmatprep.subr.mxu0 0.0
    %566 = vmatpush2.msra.mxu0 0.0
    %567 = vmatprep.subr.mxu0 0.0
    %568 = vmatpush2.msra.mxu0 0.0
    %569 = vmatprep.subr.mxu0 0.0
    %570 = vmatpush2.msra.mxu0 0.0
    %571 = vmatprep.subr.mxu0 0.0
    %572 = vmatpush2.msra.mxu0 0.0
    %573 = vmatprep.subr.mxu0 0.0
    %574 = vmatpush2.msra.mxu0 0.0
    %575 = vmatprep.subr.mxu0 0.0
    %576 = vmatpush2.msra.mxu0 0.0
    %577 = vmatprep.subr.mxu0 0.0
    %578 = vmatpush2.msra.mxu0 0.0
    %579 = vmatprep.subr.mxu0 0.0
    %580 = vmatpush2.msra.mxu0 0.0
    %581 = vmatprep.subr.mxu0 0.0
    %582 = vmatpush2.msra.mxu0 0.0
    %583 = vmatprep.subr.mxu0 0.0
    %584 = vmatpush2.msra.mxu0 0.0
    %585 = vmatprep.subr.mxu0 0.0
    %586 = vmatpush2.msra.mxu0 0.0
    %587 = vmatprep.subr.mxu0 0.0
    %588 = vmatpush2.msra.mxu0 0.0
    %589 = vmatprep.subr.mxu0 0.0
    %590 = vmatpush2.msra.mxu0 0.0
    %591 = vmatprep.subr.mxu0 0.0
    %592 = vmatpush2.msra.mxu0 0.0
    %593 = vmatprep.mubr.f32.mxu0 0.0
    %594 = vmatmul.mubr.f32.gmra.mxu0 %v505
    %v595 = vpop.f32.mrf.mxu0
    %v596 = vadd.f32 %v527, %v595
    %v597 = vpop.f32.mrf.mxu0
    %598 = vdwg.mxu0
    %v599 = vtanh.pop %v596
    %v600 = vld [vmem:[%s7] sm:$0xff]
    %v601 = vld [vmem:[%s7 + $0x8] sm:$0xff]
    %v602 = vld [vmem:[%s7 + $0x10] sm:$0xff]
    %v603 = vld [vmem:[%s7 + $0x18] sm:$0xff]
    %v604 = vld [vmem:[%s7 + $0x20] sm:$0xff]
    %v605 = vld [vmem:[%s7 + $0x28] sm:$0xff]
    %v606 = vld [vmem:[%s7 + $0x30] sm:$0xff]
    %v607 = vld [vmem:[%s7 + $0x38] sm:$0xff]
    %v608 = vld [vmem:[%s7 + $0x40] sm:$0xff]
    %v609 = vld [vmem:[%s7 + $0x48] sm:$0xff]
    %v610 = vld [vmem:[%s7 + $0x50] sm:$0xff]
    %v611 = vld [vmem:[%s7 + $0x58] sm:$0xff]
    %v612 = vld [vmem:[%s7 + $0x60] sm:$0xff]
    %v613 = vld [vmem:[%s7 + $0x68] sm:$0xff]
    %v614 = vld [vmem:[%s7 + $0x70] sm:$0xff]
    %v615 = vld [vmem:[%s7 + $0x78] sm:$0xff]
    %616 = vmatprep.subr.mxu0 0.0
    %617 = vmatpush1.msra.mxu0 %v615
    %618 = vmatprep.subr.mxu0 0.0
    %619 = vmatpush1.msra.mxu0 %v614
    %620 = vmatprep.subr.mxu0 0.0
    %621 = vmatpush1.msra.mxu0 %v613
    %622 = vmatprep.subr.mxu0 0.0
    %623 = vmatpush1.msra.mxu0 %v612
    %624 = vmatprep.subr.mxu0 0.0
    %625 = vmatpush1.msra.mxu0 %v611
    %626 = vmatprep.subr.mxu0 0.0
    %627 = vmatpush1.msra.mxu0 %v610
    %628 = vmatprep.subr.mxu0 0.0
    %629 = vmatpush1.msra.mxu0 %v609
    %630 = vmatprep.subr.mxu0 0.0
    %631 = vmatpush1.msra.mxu0 %v608
    %632 = vmatprep.subr.mxu0 0.0
    %633 = vmatpush1.msra.mxu0 %v607
    %634 = vmatprep.subr.mxu0 0.0
    %635 = vmatpush1.msra.mxu0 %v606
    %636 = vmatprep.subr.mxu0 0.0
    %637 = vmatpush1.msra.mxu0 %v605
    %638 = vmatprep.subr.mxu0 0.0
    %639 = vmatpush1.msra.mxu0 %v604
    %640 = vmatprep.subr.mxu0 0.0
    %641 = vmatpush1.msra.mxu0 %v603
    %642 = vmatprep.subr.mxu0 0.0
    %643 = vmatpush1.msra.mxu0 %v602
    %644 = vmatprep.subr.mxu0 0.0
    %645 = vmatpush1.msra.mxu0 %v601
    %646 = vmatprep.subr.mxu0 0.0
    %647 = vmatpush1.msra.mxu0 %v600
    %648 = vmatprep.subr.mxu0 0.0
    %649 = vmatpush2.msra.mxu0 0.0
    %650 = vmatprep.subr.mxu0 0.0
    %651 = vmatpush2.msra.mxu0 0.0
    %652 = vmatprep.subr.mxu0 0.0
    %653 = vmatpush2.msra.mxu0 0.0
    %654 = vmatprep.subr.mxu0 0.0
    %655 = vmatpush2.msra.mxu0 0.0
    %656 = vmatprep.subr.mxu0 0.0
    %657 = vmatpush2.msra.mxu0 0.0
    %658 = vmatprep.subr.mxu0 0.0
    %659 = vmatpush2.msra.mxu0 0.0
    %660 = vmatprep.subr.mxu0 0.0
    %661 = vmatpush2.msra.mxu0 0.0
    %662 = vmatprep.subr.mxu0 0.0
    %663 = vmatpush2.msra.mxu0 0.0
    %664 = vmatprep.subr.mxu0 0.0
    %665 = vmatpush2.msra.mxu0 0.0
    %666 = vmatprep.subr.mxu0 0.0
    %667 = vmatpush2.msra.mxu0 0.0
    %668 = vmatprep.subr.mxu0 0.0
    %669 = vmatpush2.msra.mxu0 0.0
    %670 = vmatprep.subr.mxu0 0.0
    %671 = vmatpush2.msra.mxu0 0.0
    %672 = vmatprep.subr.mxu0 0.0
    %673 = vmatpush2.msra.mxu0 0.0
    %674 = vmatprep.subr.mxu0 0.0
    %675 = vmatpush2.msra.mxu0 0.0
    %676 = vmatprep.subr.mxu0 0.0
    %677 = vmatpush2.msra.mxu0 0.0
    %678 = vmatprep.subr.mxu0 0.0
    %679 = vmatpush2.msra.mxu0 0.0
    %680 = vmatprep.mubr.f32.mxu0 0.0
    %681 = vmatmul.mubr.f32.gmra.mxu0 %v599
    %v682 = vpop.f32.mrf.mxu0
    %v683 = vadd.f32 0.0, %v682
    %v684 = vpop.f32.mrf.mxu0
    %685 = vdwg.mxu0
    %686 = vst [vmem:[#allocation7] sm:$0xff] %v599
    %vm687 = vcmask 97280
    %688 = vst.msk [vmem:[#allocation8] sm:$0xff] %vm687, %v683
    // Predicated region
    $region42: #{tpu_custom_call.1} parent=1 // pred_check
      _
    $region43: #{tpu_custom_call.1} parent=1 // pred_check_branch
      %690 = sbr.rel (0) target = $region45
    $region44: #{tpu_custom_call.1} parent=1 // pred_region
      %s692 = ssub.s32 128, 128
      %693 = vsyncadd [#allocation4], %s692
      %s695 = sshll.u32 [#allocation7], 4
      %s696 = int_to_ptr.vmem [resolvable:$true] %s695
      %698 = dma.vmem_to_hbm [thread:$0]  %s696, 128, %s8, [#allocation4]
    $region45: #{tpu_custom_call.1} parent=1 // pred_fallthru
      _
    // Predicated region
    $region46: #{tpu_custom_call.1} parent=1 // pred_check
      _
    $region47: #{tpu_custom_call.1} parent=1 // pred_check_branch
      %700 = sbr.rel (0) target = $region49
    $region48: #{tpu_custom_call.1} parent=1 // pred_region
      %s702 = ssub.s32 128, 128
      %703 = vsyncadd [#allocation9], %s702
      %s705 = sshll.u32 [#allocation8], 4
      %s706 = int_to_ptr.vmem [resolvable:$true] %s705
      %708 = dma.vmem_to_hbm [thread:$0]  %s706, 128, %s9, [#allocation9]
    $region49: #{tpu_custom_call.1} parent=1 // pred_fallthru
      _
    // Predicated region
    $region50: #{tpu_custom_call.1} parent=1 // pred_check
      _
    $region51: #{tpu_custom_call.1} parent=1 // pred_check_branch
      %710 = sbr.rel (0) target = $region53
    $region52: #{tpu_custom_call.1} parent=1 // pred_region
      %711 = dma.done [#allocation4], 128
    $region53: #{tpu_custom_call.1} parent=1 // pred_fallthru
      _
    // Predicated region
    $region54: #{tpu_custom_call.1} parent=1 // pred_check
      _
    $region55: #{tpu_custom_call.1} parent=1 // pred_check_branch
      %713 = sbr.rel (0) target = $region57
    $region56: #{tpu_custom_call.1} parent=1 // pred_region
      %714 = dma.done [#allocation9], 128
    $region57: #{tpu_custom_call.1} parent=1 // pred_fallthru
      _
    %715 = vsyncpa [#allocation3], 1
    %716 = vsyncpa [#allocation6], 1
    %717 = vsyncpa [#allocation4], 1
    %718 = vsyncpa [#allocation9], 1

</llo_original>
